<compile_context>
chip_gen: v7x
topology: tpu7x:2x2x1
jax: 0.10.0
libtpu: 0.0.40
codegen_flags: <defaults>
</compile_context>

<pallas_src>
import jax
import jax.numpy as jnp
from jax.experimental import pallas as pl
from jax.experimental.pallas import tpu as pltpu


_TARGET_INPUT_TILE_BYTES = 4 * 1024 * 1024  # ~4 MiB per input buffer: safe on v5e..v7x


def _tsn_mean_kernel(x_ref, o_ref):
    """x_ref: (BT, T, D) block;  o_ref: (BT, D) block (lane/sublane dense)."""
    t = x_ref.shape[1]
    inv_t = jnp.float32(1.0 / t)                              # compile-time constant
    acc = jnp.sum(x_ref[...].astype(jnp.float32), axis=1)     # f32 accumulation over T
    o_ref[...] = (acc * inv_t).astype(o_ref.dtype)


def _choose_block_batch(B, T, D, itemsize):
    """How many batch rows per tile: multiple of 8, ~4 MiB of input per buffer."""
    per_row = T * D * itemsize
    bt = max(1, _TARGET_INPUT_TILE_BYTES // per_row)
    if bt >= B:
        return B                        # whole batch fits in one dense tile
    bt = max(8, (bt // 8) * 8)          # keep (8,128)-friendly (BT, D) output blocks
    return min(bt, B)


def tsn_forward(x, *, block_batch=None):
    """x: (B, T, D) -> (B, 1, D), mean over frames (dim=1, keepdim=True)."""
    B, T, D = x.shape
    itemsize = jnp.dtype(x.dtype).itemsize
    bt = block_batch if block_batch is not None else _choose_block_batch(B, T, D, itemsize)
    bt = min(int(bt), B)
    grid = (pl.cdiv(B, bt),)            # partial tail tile is masked by Pallas

    # Double-buffered input + output tiles, with headroom; fine on v5e/v6e/v7x.
    in_tile = bt * T * D * itemsize
    out_tile = bt * D * itemsize
    vmem_limit = int(max(2 * (in_tile + out_tile) + (2 << 20), 32 << 20))

    out2d = pl.pallas_call(
        _tsn_mean_kernel,
        out_shape=jax.ShapeDtypeStruct((B, D), x.dtype),
        grid_spec=pltpu.PrefetchScalarGridSpec(
            num_scalar_prefetch=0,
            grid=grid,
            in_specs=[pl.BlockSpec((bt, T, D), lambda b: (b, 0, 0))],
            out_specs=pl.BlockSpec((bt, D), lambda b: (b, 0)),
        ),
        compiler_params=pltpu.CompilerParams(
            dimension_semantics=("parallel",),
            vmem_limit_bytes=vmem_limit,
        ),
    )(x)
    # keepdim=True semantics: free metadata reshape outside the kernel.
    return out2d[:, None, :]


class TSNmoduleJax:
    """JAX/Pallas port of TSNmodule. No learnable parameters are used in forward."""

    def __init__(self, img_feature_dim, num_frames, num_class):
        self.img_feature_dim = img_feature_dim
        self.num_frames = num_frames
        self.num_class = num_class
        # NOTE: the original __init__ stores dims but defines no weights used in forward.

    def __call__(self, x):
        return tsn_forward(x)


if __name__ == "__main__":
    key = jax.random.PRNGKey(0)
    k0, k1, k2 = jax.random.split(key, 3)

    # ---- small shape consistent with the module: batch=2, num_frames=8, D=32 ----
    batch, num_frames, img_feature_dim, num_class = 2, 8, 32, 10
    x = jax.random.normal(k0, (batch, num_frames, img_feature_dim), dtype=jnp.float32)

    mod = TSNmoduleJax(img_feature_dim, num_frames, num_class)
    out = jax.block_until_ready(mod(x))
    ref = jnp.mean(x, axis=1, keepdims=True)
    assert out.shape == (batch, 1, img_feature_dim), out.shape
    assert jnp.allclose(out, ref, atol=1e-6, rtol=1e-6)

    # ---- exercise the multi-tile path (8-row tiles + masked partial tail tile) ----
    x2 = jax.random.normal(k1, (20, 8, 128), dtype=jnp.float32)
    out2 = jax.block_until_ready(tsn_forward(x2, block_batch=8))
    ref2 = jnp.mean(x2, axis=1, keepdims=True)
    assert out2.shape == (20, 1, 128), out2.shape
    assert jnp.allclose(out2, ref2, atol=1e-5, rtol=1e-5)

    # ---- bf16 input (halved HBM traffic), f32 accumulation inside the kernel ----
    x3 = jax.random.normal(k2, (batch, num_frames, img_feature_dim), dtype=jnp.bfloat16)
    out3 = jax.block_until_ready(tsn_forward(x3))
    ref3 = jnp.mean(x3.astype(jnp.float32), axis=1, keepdims=True)
    assert jnp.allclose(out3.astype(jnp.float32), ref3, atol=1e-2, rtol=1e-2)

    print("KERNEL_OK")
</pallas_src>

<mosaic_0001>
module attributes {stable_mosaic.version = 11 : i64} {
  func.func @_tsn_mean_kernel(%arg0: i32, %arg1: memref<2x8x32xf32, #tpu.memory_space<vmem>>, %arg2: memref<2x32xf32, #tpu.memory_space<vmem>>) attributes {dimension_semantics = [#tpu.dimension_semantics<parallel>], iteration_bounds = array<i64: 1>, scalar_prefetch = 0 : i64, scratch_operands = 0 : i64, tpu.core_type = #tpu.core_type<tc>, window_params = [{transform_indices = @transform_0, window_bounds = array<i64: 2, 8, 32>}, {transform_indices = @transform_1, window_bounds = array<i64: 2, 32>}]} {
    %c0 = arith.constant 0 : index
    %c0_0 = arith.constant 0 : index
    %c0_1 = arith.constant 0 : index
    %0 = vector.load %arg1[%c0, %c0_0, %c0_1] : memref<2x8x32xf32, #tpu.memory_space<vmem>>, vector<2x8x32xf32>
    %cst = arith.constant dense<0.000000e+00> : vector<2x32xf32>
    %1 = vector.multi_reduction <add>, %0, %cst [1] : vector<2x8x32xf32> to vector<2x32xf32>
    %cst_2 = arith.constant 1.250000e-01 : f32
    %2 = vector.broadcast %cst_2 : f32 to vector<2x32xf32>
    %3 = arith.mulf %1, %2 : vector<2x32xf32>
    %c0_3 = arith.constant 0 : index
    %c0_4 = arith.constant 0 : index
    %4 = vector.load %arg2[%c0_3, %c0_4] : memref<2x32xf32, #tpu.memory_space<vmem>>, vector<2x32xf32>
    tpu.vector_store %arg2[%c0_3, %c0_4], %3 {strides = array<i32>} : memref<2x32xf32, #tpu.memory_space<vmem>>, vector<2x32xf32>,
    return
  }
  func.func @transform_0(%arg0: i32) -> (i32, i32, i32) {
    %c0_i32 = arith.constant 0 : i32
    %c0_i32_0 = arith.constant 0 : i32
    %c0_i32_1 = arith.constant 0 : i32
    return %arg0, %c0_i32, %c0_i32_0 : i32, i32, i32
  }
  func.func @transform_1(%arg0: i32) -> (i32, i32) {
    %c0_i32 = arith.constant 0 : i32
    %c0_i32_0 = arith.constant 0 : i32
    return %arg0, %c0_i32 : i32, i32
  }
}

</mosaic_0001>

<llo_original>
// kernel: tpu_custom_call.1
$region0: #{tpu_custom_call.1}
  #allocation0 [shape = 'u32[]', space=smem, size = 0x4, offset = 0x4, fixed_abs, tag = 'smem constant byte address 0x4 - core index']
  #allocation1 [shape = 'u32[144,128]{1,0:T(1,128)}', space=vmem, size = 0x12000, scoped, tag = 'internal scratch']
  %s0 = inlined_call_operand.hbm [shape: f32[2,8,32], index: 0, kind: input, shape index: {}]
  %s1 = inlined_call_operand.hbm [shape: f32[2,32], index: 1, kind: output, shape index: {}]
  %s2 = sld [smem:[#allocation0]]
  $region18: #{tpu_custom_call.1} parent=0
    _
  %s4 = ssub.s32 1, %s2
  %s5 = scalar_select 0, %s4, %s2
  $region1: #{tpu_custom_call.1} parent=0
    #allocation2 [shape = 'u8[8192]{0}', space=vmem, size = 0x2000, scoped, tag = 'input window, operand 0, single buffered']
    #allocation3 [shape = 's32[1]{0}', space=sflag, size = 0x4, scoped, tag = 'scoped memory for tpu_custom_call.1']
    #allocation4 [shape = 's32[1]{0}', space=sflag, size = 0x4, scoped, tag = 'scoped memory for tpu_custom_call.1']
    #allocation5 [shape = 'u8[1024]{0}', space=vmem, size = 0x400, scoped, tag = 'output window, operand 0, single buffered']
    %6 = vsyncpa [#allocation3], 0
    %7 = vsyncpa [#allocation4], 0
    // Predicated region
    $region2: #{tpu_custom_call.1} parent=1 // pred_check
      _
    $region3: #{tpu_custom_call.1} parent=1 // pred_check_branch
      %9 = sbr.rel (0) target = $region5
    $region4: #{tpu_custom_call.1} parent=1 // pred_region
      %s11 = ssub.s32 256, 256
      %12 = vsyncadd [#allocation3], %s11
      %s13 = sshll.u32 [#allocation2], 4
      %s14 = int_to_ptr.vmem [resolvable:$true] %s13
      %19 = dma.hbm_to_vmem [thread:$0]  %s0, 256, %s14, [#allocation3], 128, 128, 8
    $region5: #{tpu_custom_call.1} parent=1 // pred_fallthru
      _
    // Predicated region
    $region6: #{tpu_custom_call.1} parent=1 // pred_check
      _
    $region7: #{tpu_custom_call.1} parent=1 // pred_check_branch
      %21 = sbr.rel (0) target = $region9
    $region8: #{tpu_custom_call.1} parent=1 // pred_region
      %22 = dma.done [#allocation3], 256
    $region9: #{tpu_custom_call.1} parent=1 // pred_fallthru
      _
    %v23 = vld [vmem:[#allocation2] sm:$0xff]
    %v24 = vld [vmem:[#allocation2 + $0x8] sm:$0xff]
    %vm25 = vcmask 261120
    %v26 = vsel %vm25, %v23, 0.0
    %v27 = vrot.slane %v26, 4
    %v28 = vadd.f32 %v26, %v27
    %v29 = vrot.slane %v28, 2
    %v30 = vadd.f32 %v28, %v29
    %v31 = vrot.slane %v30, 1
    %v32 = vadd.f32 %v30, %v31
    %v33 = vsel %vm25, %v24, 0.0
    %v34 = vrot.slane %v33, 4
    %v35 = vadd.f32 %v33, %v34
    %v36 = vrot.slane %v35, 2
    %v37 = vadd.f32 %v35, %v36
    %v38 = vrot.slane %v37, 1
    %v39 = vadd.f32 %v37, %v38
    %v40 = vmul.f32 %v32, 0.125
    %v41 = vmul.f32 %v39, 0.125
    %vm44 = vcmask 1041409
    %v45 = vsel %vm44, %v41, %v40
    %vm47 = vcmask 254976
    %48 = vst.msk [vmem:[#allocation5] sm:$0x3] %vm47, %v45
    // Predicated region
    $region10: #{tpu_custom_call.1} parent=1 // pred_check
      _
    $region11: #{tpu_custom_call.1} parent=1 // pred_check_branch
      %50 = sbr.rel (0) target = $region13
    $region12: #{tpu_custom_call.1} parent=1 // pred_region
      %s52 = ssub.s32 32, 32
      %53 = vsyncadd [#allocation4], %s52
      %s55 = sshll.u32 [#allocation5], 4
      %s56 = int_to_ptr.vmem [resolvable:$true] %s55
      %58 = dma.vmem_to_hbm [thread:$0]  %s56, 32, %s1, [#allocation4]
    $region13: #{tpu_custom_call.1} parent=1 // pred_fallthru
      _
    // Predicated region
    $region14: #{tpu_custom_call.1} parent=1 // pred_check
      _
    $region15: #{tpu_custom_call.1} parent=1 // pred_check_branch
      %60 = sbr.rel (0) target = $region17
    $region16: #{tpu_custom_call.1} parent=1 // pred_region
      %61 = dma.done [#allocation4], 32
    $region17: #{tpu_custom_call.1} parent=1 // pred_fallthru
      _
    %62 = vsyncpa [#allocation3], 1
    %63 = vsyncpa [#allocation4], 1

</llo_original>
